<compile_context>
chip_gen: v7x
topology: tpu7x:2x2x1
jax: 0.10.0
libtpu: 0.0.40
codegen_flags: <defaults>
</compile_context>

<pallas_src>
import functools

import jax
import jax.numpy as jnp
from jax.experimental import pallas as pl
from jax.experimental.pallas import tpu as pltpu


def _fold_sublanes(x, fold_rows):
    """Sum groups of `fold_rows` rows with pure VPU adds (no cross-lane XLU)."""
    tb, w = x.shape
    if tb == fold_rows:
        return x
    return jnp.sum(x.reshape(tb // fold_rows, fold_rows, w), axis=0)


def _nll_loss_kernel(pred_ref, target_ref, out_ref, acc_main_ref, acc_lse_ref,
                     *, total_rows, block_rows, blocks_per_shard, from_logits,
                     target_resident, fold_rows):
    shard = pl.program_id(0)
    step = pl.program_id(1)

    @pl.when(step == 0)
    def _init():
        acc_main_ref[...] = jnp.zeros_like(acc_main_ref)
        acc_lse_ref[...] = jnp.zeros_like(acc_lse_ref)

    pred = pred_ref[...].astype(jnp.float32)           # (tb, C) in-kernel upcast
    tb, num_classes = pred.shape

    nb_total = (total_rows + block_rows - 1) // block_rows
    gidx = shard * blocks_per_shard + step             # unclamped global block id
    rows_left = total_rows - gidx * block_rows         # scalar; <=0 for overhang

    if target_resident:
        # Whole (padded) target array is resident in VMEM; slice the rows of
        # this block.  Start is clamped so the slice is always in-bounds.
        clamped = jnp.minimum(gidx, nb_total - 1)
        start = clamped * block_rows
        if block_rows % 8 == 0:
            start = pl.multiple_of(start, 8)
        tgt = target_ref[pl.ds(start, tb), :]           # (tb, 1) int32
    else:
        tgt = target_ref[...]                           # (tb, 1) int32

    row_iota = jax.lax.broadcasted_iota(jnp.int32, (tb, 1), 0)
    # Valid rows: inside the batch AND with an in-range target (invalid targets
    # contribute 0 consistently in both modes).
    row_valid = (row_iota < rows_left) & (tgt >= 0) & (tgt < num_classes)

    col_ids = jax.lax.broadcasted_iota(jnp.int32, (tb, num_classes), 1)
    select = (col_ids == tgt) & row_valid               # one-hot gather mask
    picked_map = jnp.where(select, pred, 0.0)           # (tb, C), VALU select

    # Deferred reduction: fold sublane groups (VPU adds) into the scratch.
    acc_main_ref[...] += _fold_sublanes(picked_map, fold_rows)

    if from_logits:
        # Fused log_softmax: loss_i = logsumexp(row_i) - logit[i, target_i].
        row_max = jnp.max(pred, axis=-1, keepdims=True)            # XLU
        exps = jnp.exp(pred - row_max)                              # EUP
        ones = jnp.ones((num_classes, 1), jnp.float32)
        sum_exp = jnp.dot(exps, ones,
                          preferred_element_type=jnp.float32)       # MXU (idle otherwise)
        lse = row_max + jnp.log(sum_exp)                            # (tb, 1)
        lse = jnp.where(row_valid, lse, 0.0)             # mask before accumulate
        acc_lse_ref[...] += _fold_sublanes(lse, fold_rows)

    @pl.when(step == pl.num_programs(1) - 1)
    def _finalize():
        picked_sum = jnp.sum(acc_main_ref[...], keepdims=True)      # (1, 1)
        if from_logits:
            out_ref[...] = jnp.sum(acc_lse_ref[...], keepdims=True) - picked_sum
        else:
            out_ref[...] = -picked_sum


def get_loss_pallas(pred, target, trans_feat=None, *, from_logits=False,
                    block_b=None, num_shards=None):
    """Pallas equivalent of get_loss.forward(pred, target, trans_feat).

    pred:   (B, C) log-probabilities (or raw logits if from_logits=True).
    target: (B,)   integer class indices.
    trans_feat is unused, exactly as in the reference module.
    """
    del trans_feat  # unused by the reference module
    B, C = pred.shape
    itemsize = jnp.dtype(pred.dtype).itemsize
    sublane = max(8, 32 // max(itemsize, 1))   # 8 f32, 16 bf16, 32 int8/fp8

    max_block_default = 8192
    if block_b is None:
        block_b = B if B <= max_block_default else max_block_default
    block_b = min(block_b, B)
    if block_b != B and block_b % sublane != 0:
        raise ValueError(
            f"block_b must equal B or be a multiple of {sublane} for dtype "
            f"{pred.dtype}")

    nb_total = -(-B // block_b)                 # ceil(B / block_b)

    if num_shards is None:
        # Split across the two TensorCores (v7x megacore) only when there is
        # enough work; a size-1 axis is a no-op on single-TC chips.
        num_shards = 2 if nb_total >= 4 else 1
    num_shards = max(1, min(num_shards, nb_total))
    bps = -(-nb_total // num_shards)            # blocks per shard

    # --- target layout: one resident VMEM copy, no per-step narrow DMAs ----
    padded_rows = nb_total * block_b
    target2d = target.reshape(B, 1).astype(jnp.int32)
    if padded_rows != B:
        target2d = jnp.pad(target2d, ((0, padded_rows - B), (0, 0)),
                           constant_values=-1)   # -1 == invalid, masked anyway
    resident_target_bytes = padded_rows * 128 * 4       # lane-padded in VMEM
    target_resident = resident_target_bytes <= (8 << 20)

    def _pred_index_map(c, i):
        # Clamp overhang blocks (when nb_total % num_shards != 0) back in range;
        # their rows are fully masked by rows_left <= 0 in the kernel.
        return (jnp.minimum(c * bps + i, nb_total - 1), 0)

    in_specs = [pl.BlockSpec((block_b, C), _pred_index_map)]
    if target_resident:
        in_specs.append(pl.BlockSpec(memory_space=pltpu.MemorySpace.VMEM))
    else:
        in_specs.append(pl.BlockSpec((block_b, 1), _pred_index_map))

    fold_rows = 8 if block_b % 8 == 0 else block_b

    kernel = functools.partial(
        _nll_loss_kernel, total_rows=B, block_rows=block_b,
        blocks_per_shard=bps, from_logits=from_logits,
        target_resident=target_resident, fold_rows=fold_rows)

    # --- explicit VMEM budget (v5e default scoped limit is only 16 MiB) ----
    lane_c = -(-C // 128) * 128
    pred_bytes = 2 * block_b * lane_c * itemsize          # double-buffered
    tgt_bytes = (resident_target_bytes if target_resident
                 else 2 * block_b * 128 * 4)
    scratch_bytes = 2 * fold_rows * 128 * 4
    needed = pred_bytes + tgt_bytes + scratch_bytes + (1 << 20)
    vmem_limit = int(min(max(needed + (4 << 20), 16 << 20), 64 << 20))

    out = pl.pallas_call(
        kernel,
        out_shape=jax.ShapeDtypeStruct((num_shards, 1), jnp.float32),
        grid=(num_shards, bps),
        in_specs=in_specs,
        # Same (1,1) block across the inner (reduction) axis -> resident per
        # shard; one block per shard along the parallel axis.
        out_specs=pl.BlockSpec((1, 1), lambda c, i: (c, 0)),
        scratch_shapes=[pltpu.VMEM((fold_rows, C), jnp.float32),
                        pltpu.VMEM((fold_rows, 1), jnp.float32)],
        compiler_params=pltpu.CompilerParams(
            dimension_semantics=("parallel", "arbitrary"),
            vmem_limit_bytes=vmem_limit),
    )(pred, target2d)

    # mean over the batch: sum shard partials, trace-time constant 1/B scale
    return jnp.sum(out) * jnp.float32(1.0 / B)


def _reference_nll_loss(pred, target):
    # pure-JAX reference (F.nll_loss, reduction='mean')
    picked = jnp.take_along_axis(pred, target[:, None].astype(jnp.int32), axis=1)
    return -jnp.mean(picked)


if __name__ == "__main__":
    key = jax.random.PRNGKey(0)
    k1, k2, k3, k4, k5 = jax.random.split(key, 5)

    # Small shapes consistent with the module (ModelNet40-style head).
    B, C = 8, 40
    logits = jax.random.normal(k1, (B, C), dtype=jnp.float32)
    pred = jax.nn.log_softmax(logits, axis=-1)            # log-probabilities
    target = jax.random.randint(k2, (B,), 0, C, dtype=jnp.int32)
    trans_feat = jax.random.normal(k3, (B, 64, 16), dtype=jnp.float32)  # unused

    ref = _reference_nll_loss(pred, target)

    # 1) module semantics: nll_loss on precomputed log-probabilities
    loss = jax.block_until_ready(get_loss_pallas(pred, target, trans_feat))
    assert jnp.allclose(loss, ref, atol=1e-5, rtol=1e-5), (loss, ref)

    # 2) fused variant: raw logits in, log_softmax folded into the kernel
    loss_fused = jax.block_until_ready(
        get_loss_pallas(logits, target, trans_feat, from_logits=True))
    assert jnp.allclose(loss_fused, ref, atol=1e-5, rtol=1e-5), (loss_fused, ref)

    # 3) tiled + 2-shard path (exercises tail masking and overhang-block clamp)
    B2 = 272
    pred2 = jax.nn.log_softmax(
        jax.random.normal(k4, (B2, C), dtype=jnp.float32), axis=-1)
    tgt2 = jax.random.randint(k5, (B2,), 0, C, dtype=jnp.int32)
    loss2 = jax.block_until_ready(
        get_loss_pallas(pred2, tgt2, block_b=64, num_shards=2))
    ref2 = _reference_nll_loss(pred2, tgt2)
    assert jnp.allclose(loss2, ref2, atol=1e-5, rtol=1e-5), (loss2, ref2)

    # 4) native bf16 log-probs (no wrapper upcast; 16-row sublane packing)
    pred_bf16 = pred2.astype(jnp.bfloat16)
    loss_bf16 = jax.block_until_ready(
        get_loss_pallas(pred_bf16, tgt2, block_b=64, num_shards=2))
    ref_bf16 = _reference_nll_loss(pred_bf16.astype(jnp.float32), tgt2)
    assert jnp.allclose(loss_bf16, ref_bf16, atol=1e-5, rtol=1e-5), (loss_bf16,
                                                                     ref_bf16)

    print("KERNEL_OK")
</pallas_src>

<mosaic_0001>
module attributes {stable_mosaic.version = 11 : i64} {
  func.func @_nll_loss_kernel(%arg0: i32, %arg1: i32, %arg2: memref<8x40xf32, #tpu.memory_space<vmem>>, %arg3: memref<8x1xi32, #tpu.memory_space<vmem>>, %arg4: memref<1x1xf32, #tpu.memory_space<vmem>>, %arg5: memref<8x40xf32, #tpu.memory_space<vmem>>, %arg6: memref<8x1xf32, #tpu.memory_space<vmem>>) attributes {dimension_semantics = [#tpu.dimension_semantics<parallel>, #tpu.dimension_semantics<arbitrary>], iteration_bounds = array<i64: 1, 1>, scalar_prefetch = 0 : i64, scratch_operands = 2 : i64, tpu.core_type = #tpu.core_type<tc>, window_params = [{transform_indices = @transform_0, window_bounds = array<i64: 8, 40>}, {pipeline_mode = #tpu.pipeline_mode<synchronous>, transform_indices = @transform_1, window_bounds = array<i64: 8, 1>}, {transform_indices = @transform_2, window_bounds = array<i64: 1, 1>}]} {
    %c0_i32 = arith.constant 0 : i32
    %0 = arith.cmpi eq, %arg1, %c0_i32 : i32
    %1 = arith.extui %0 : i1 to i32
    %c0_i32_0 = arith.constant 0 : i32
    %2 = arith.cmpi ne, %1, %c0_i32_0 : i32
    scf.if %2 {
      %cst_13 = arith.constant 0.000000e+00 : f32
      %35 = vector.broadcast %cst_13 : f32 to vector<8x40xf32>
      %c0_14 = arith.constant 0 : index
      %c0_15 = arith.constant 0 : index
      %36 = vector.load %arg5[%c0_14, %c0_15] : memref<8x40xf32, #tpu.memory_space<vmem>>, vector<8x40xf32>
      tpu.vector_store %arg5[%c0_14, %c0_15], %35 {strides = array<i32>} : memref<8x40xf32, #tpu.memory_space<vmem>>, vector<8x40xf32>,
      %cst_16 = arith.constant 0.000000e+00 : f32
      %37 = vector.broadcast %cst_16 : f32 to vector<8x1xf32>
      %c0_17 = arith.constant 0 : index
      %c0_18 = arith.constant 0 : index
      %38 = vector.load %arg6[%c0_17, %c0_18] : memref<8x1xf32, #tpu.memory_space<vmem>>, vector<8x1xf32>
      tpu.vector_store %arg6[%c0_17, %c0_18], %37 {strides = array<i32>} : memref<8x1xf32, #tpu.memory_space<vmem>>, vector<8x1xf32>,
    } else {
    }
    %c0 = arith.constant 0 : index
    %c0_1 = arith.constant 0 : index
    %3 = vector.load %arg2[%c0, %c0_1] : memref<8x40xf32, #tpu.memory_space<vmem>>, vector<8x40xf32>
    %c1_i32 = arith.constant 1 : i32
    %4 = arith.muli %arg0, %c1_i32 : i32
    %5 = arith.addi %4, %arg1 : i32
    %c8_i32 = arith.constant 8 : i32
    %6 = arith.muli %5, %c8_i32 : i32
    %c8_i32_2 = arith.constant 8 : i32
    %7 = arith.subi %c8_i32_2, %6 : i32
    %c0_i32_3 = arith.constant 0 : i32
    %8 = arith.minsi %5, %c0_i32_3 : i32
    %c8_i32_4 = arith.constant 8 : i32
    %9 = arith.muli %8, %c8_i32_4 : i32
    %10 = tpu.assume_multiple %9, 8 : i32
    %11 = arith.index_cast %10 : i32 to index
    %c0_5 = arith.constant 0 : index
    %12 = vector.load %arg3[%11, %c0_5] : memref<8x1xi32, #tpu.memory_space<vmem>>, vector<8x1xi32>
    %13 = tpu.iota {dimensions = array<i32: 0>} : vector<8x1xi32>
    %14 = vector.broadcast %7 : i32 to vector<8x1xi32>
    %15 = arith.cmpi slt, %13, %14 : vector<8x1xi32>
    %c0_i32_6 = arith.constant 0 : i32
    %16 = vector.broadcast %c0_i32_6 : i32 to vector<8x1xi32>
    %17 = arith.cmpi sge, %12, %16 : vector<8x1xi32>
    %18 = arith.andi %15, %17 : vector<8x1xi1>
    %c40_i32 = arith.constant 40 : i32
    %19 = vector.broadcast %c40_i32 : i32 to vector<8x1xi32>
    %20 = arith.cmpi slt, %12, %19 : vector<8x1xi32>
    %21 = arith.andi %18, %20 : vector<8x1xi1>
    %22 = tpu.iota {dimensions = array<i32: 1>} : vector<8x40xi32>
    %23 = vector.broadcast %12 : vector<8x1xi32> to vector<8x40xi32>
    %24 = arith.cmpi eq, %22, %23 : vector<8x40xi32>
    %25 = vector.broadcast %21 : vector<8x1xi1> to vector<8x40xi1>
    %26 = arith.andi %24, %25 : vector<8x40xi1>
    %cst = arith.constant 0.000000e+00 : f32
    %27 = vector.broadcast %cst : f32 to vector<8x40xf32>
    %28 = arith.select %26, %3, %27 : vector<8x40xi1>, vector<8x40xf32>
    %c0_7 = arith.constant 0 : index
    %c0_8 = arith.constant 0 : index
    %29 = vector.load %arg5[%c0_7, %c0_8] : memref<8x40xf32, #tpu.memory_space<vmem>>, vector<8x40xf32>
    %30 = arith.addf %29, %28 : vector<8x40xf32>
    %c0_9 = arith.constant 0 : index
    %c0_10 = arith.constant 0 : index
    %31 = vector.load %arg5[%c0_9, %c0_10] : memref<8x40xf32, #tpu.memory_space<vmem>>, vector<8x40xf32>
    tpu.vector_store %arg5[%c0_9, %c0_10], %30 {strides = array<i32>} : memref<8x40xf32, #tpu.memory_space<vmem>>, vector<8x40xf32>,
    %c0_i32_11 = arith.constant 0 : i32
    %32 = arith.cmpi eq, %arg1, %c0_i32_11 : i32
    %33 = arith.extui %32 : i1 to i32
    %c0_i32_12 = arith.constant 0 : i32
    %34 = arith.cmpi ne, %33, %c0_i32_12 : i32
    scf.if %34 {
      %c0_13 = arith.constant 0 : index
      %c0_14 = arith.constant 0 : index
      %35 = vector.load %arg5[%c0_13, %c0_14] : memref<8x40xf32, #tpu.memory_space<vmem>>, vector<8x40xf32>
      %36 = vector.shape_cast %35 : vector<8x40xf32> to vector<1x8x40xf32>
      %cst_15 = arith.constant dense<0.000000e+00> : vector<1xf32>
      %37 = vector.multi_reduction <add>, %36, %cst_15 [1, 2] : vector<1x8x40xf32> to vector<1xf32>
      %38 = vector.shape_cast %37 : vector<1xf32> to vector<1x1x1xf32>
      %39 = vector.extract %38[0, 0, 0] : f32 from vector<1x1x1xf32>
      %40 = vector.broadcast %39 : f32 to vector<1x1xf32>
      %cst_16 = arith.constant 0.000000e+00 : f32
      %41 = vector.broadcast %cst_16 : f32 to vector<1x1xf32>
      %42 = arith.subf %41, %40 : vector<1x1xf32>
      %c0_17 = arith.constant 0 : index
      %c0_18 = arith.constant 0 : index
      %43 = vector.load %arg4[%c0_17, %c0_18] : memref<1x1xf32, #tpu.memory_space<vmem>>, vector<1x1xf32>
      tpu.vector_store %arg4[%c0_17, %c0_18], %42 {strides = array<i32>} : memref<1x1xf32, #tpu.memory_space<vmem>>, vector<1x1xf32>,
    } else {
    }
    return
  }
  func.func @transform_0(%arg0: i32, %arg1: i32) -> (i32, i32) {
    %c1_i32 = arith.constant 1 : i32
    %0 = arith.muli %arg0, %c1_i32 : i32
    %1 = arith.addi %0, %arg1 : i32
    %c0_i32 = arith.constant 0 : i32
    %2 = arith.minsi %1, %c0_i32 : i32
    %c0_i32_0 = arith.constant 0 : i32
    %c0_i32_1 = arith.constant 0 : i32
    return %2, %c0_i32_0 : i32, i32
  }
  func.func @transform_1(%arg0: i32, %arg1: i32) -> (i32, i32) {
    %c0_i32 = arith.constant 0 : i32
    %c0_i32_0 = arith.constant 0 : i32
    %c0_i32_1 = arith.constant 0 : i32
    return %c0_i32, %c0_i32_0 : i32, i32
  }
  func.func @transform_2(%arg0: i32, %arg1: i32) -> (i32, i32) {
    %c0_i32 = arith.constant 0 : i32
    %c0_i32_0 = arith.constant 0 : i32
    return %arg0, %c0_i32 : i32, i32
  }
}

</mosaic_0001>

<llo_original>
// kernel: tpu_custom_call.1
$region0: #{tpu_custom_call.1}
  #allocation0 [shape = 'u32[]', space=smem, size = 0x4, offset = 0x4, fixed_abs, tag = 'smem constant byte address 0x4 - core index']
  #allocation1 [shape = 'u32[144,128]{1,0:T(1,128)}', space=vmem, size = 0x12000, scoped, tag = 'internal scratch']
  #allocation2 [shape = 'f32[8,40]{1,0:T(8,128)}', space=vmem, size = 0x1000, scoped, tag = 'scratch operand']
  #allocation3 [shape = 'f32[8,1]{1,0:T(8,128)}', space=vmem, size = 0x1000, scoped, tag = 'scratch operand']
  %s0 = inlined_call_operand.vmem [shape: f32[8,40], index: 0, kind: input, shape index: {}]
  %s1 = inlined_call_operand.vmem [shape: s32[8,1], index: 1, kind: input, shape index: {}]
  %s2 = inlined_call_operand.hbm [shape: f32[1,1], index: 2, kind: output, shape index: {}]
  %s3 = sld [smem:[#allocation0]]
  $region26: #{tpu_custom_call.1} parent=0
    _
  %s5 = ssub.s32 1, %s3
  %s6 = scalar_select 0, %s5, %s3
  $region1: #{tpu_custom_call.1} parent=0
    #allocation4 [shape = 'u8[512]{0}', space=vmem, size = 0x400, scoped, tag = 'output window, operand 0, single buffered']
    #allocation5 [shape = 's32[1]{0}', space=sflag, size = 0x4, scoped, tag = 'scoped memory for tpu_custom_call.1']
    %7 = vsyncpa [#allocation5], 0
    // Predicated region
    $region2: #{tpu_custom_call.1} parent=1 // pred_check
      _
    $region3: #{tpu_custom_call.1} parent=1 // pred_check_branch
      %9 = sbr.rel (0) target = $region5
    $region4: #{tpu_custom_call.1} parent=1 // pred_region
      %s10 = sadd.s32 0, 0
      %p11 = scmp.lt.s32.totalorder %s10, 0
      %s12 = scalar_select %p11, %s10, 0
      %p13 = scmp.lt.s32.totalorder %s12, 0
      %s14 = scalar_select %p13, %s12, 0
      %s15 = smul.addr %s14, 8
      %s16 = scalar_lea.vmem %s0, %s15
      %s17 = sadd.s32 0, 0
      %p18 = scmp.lt.s32.totalorder %s17, 0
      %s19 = scalar_select %p18, %s17, 0
    $region5: #{tpu_custom_call.1} parent=1 // pred_fallthru
      _
    // Predicated region
    $region6: #{tpu_custom_call.1} parent=1 // pred_check
      _
    $region7: #{tpu_custom_call.1} parent=1 // pred_check_branch
      %21 = sbr.rel (0) target = $region9
    $region8: #{tpu_custom_call.1} parent=1 // pred_region
      _
    $region9: #{tpu_custom_call.1} parent=1 // pred_fallthru
      _
    %s22 = sadd.s32 0, 0
    %p23 = scmp.lt.s32.totalorder %s22, 0
    %s24 = scalar_select %p23, %s22, 0
    %p25 = scmp.lt.s32.totalorder %s24, 0
    %s26 = scalar_select %p25, %s24, 0
    %s27 = smul.addr %s26, 8
    %s28 = scalar_lea.vmem %s0, %s27
    %s29 = sadd.s32 0, 0
    %p30 = scmp.lt.s32.totalorder %s29, 0
    %s31 = scalar_select %p30, %s29, 0
    %p32 = scmp.lt.s32.totalorder %s31, 0
    %s33 = scalar_select %p32, %s31, 0
    %s34 = smul.addr %s33, 8
    %s35 = scalar_lea.vmem %s0, %s34
    %s36 = sadd.s32 0, 0
    %p37 = scmp.lt.s32.totalorder %s36, 0
    %s38 = scalar_select %p37, %s36, 0
    %p39 = scmp.eq.s32.totalorder 0, 0
    // Predicated region
    $region10: #{tpu_custom_call.1} parent=1 // pred_check
      %p40 = pneg %p39
    $region11: #{tpu_custom_call.1} parent=1 // pred_check_branch
      %42 = sbr.rel (%p40) target = $region13
    $region12: #{tpu_custom_call.1} parent=1 // pred_region
      %vm43 = vcmask 326656
      %44 = vst.msk [vmem:[#allocation2] sm:$0xff] %vm43, 0.0
      %vm45 = vcmask 7168
      %46 = vst.msk [vmem:[#allocation3] sm:$0xff] %vm45, 0.0
    $region13: #{tpu_custom_call.1} parent=1 // pred_fallthru
      _
    %v47 = vld [vmem:[%s35] sm:$0xff]
    %s48 = sadd.s32 0, 0
    %s49 = smul.u32 %s48, 8
    %s50 = ssub.s32 8, %s49
    %p51 = scmp.lt.s32.totalorder %s48, 0
    %s52 = scalar_select %p51, %s48, 0
    %s53 = smul.u32 %s52, 8
    %s54 = scalar_lea.vmem %s1, %s53
    %v55 = vld [vmem:[%s54] sm:$0xff]
    %v56 = vlaneseq
    %v57 = vshrl.u32 %v56, 7
    %v58 = vstv %s50
    %vm59 = vcmp.lt.s32.totalorder %v57, %v58
    %vm60 = vcmp.ge.s32.totalorder %v55, 0
    %vm61 = vmand %vm59, %vm60
    %vm62 = vcmp.lt.s32.totalorder %v55, 40
    %vm63 = vmand %vm61, %vm62
    %v64 = vlaneseq
    %v65 = vand.u32 %v64, 127
    %66 = vset.pattern.permute.xlu0 0
    %67 = vperm.xlu0 %66, %v55
    %v68 = vpop.permute.xlu0 %67
    %vm69 = vcmp.eq.s32.totalorder %v65, %v68
    %v70 = vsel %vm63, 1, 0
    %71 = vset.pattern.permute.xlu0 0
    %72 = vperm.xlu0 %71, %v70
    %v73 = vpop.permute.xlu0 %72
    %vm74 = vcmp.eq.s32.totalorder %v73, 1
    %vm75 = vmand %vm69, %vm74
    %v76 = vsel %vm75, %v47, 0.0
    %v77 = vld [vmem:[#allocation2] sm:$0xff]
    %v78 = vadd.f32 %v77, %v76
    %vm79 = vcmask 326656
    %80 = vst.msk [vmem:[#allocation2] sm:$0xff] %vm79, %v78
    // Predicated region
    $region14: #{tpu_custom_call.1} parent=1 // pred_check
      %p81 = pneg %p39
    $region15: #{tpu_custom_call.1} parent=1 // pred_check_branch
      %83 = sbr.rel (%p81) target = $region17
    $region16: #{tpu_custom_call.1} parent=1 // pred_region
      %v84 = vld [vmem:[#allocation2] sm:$0xff]
      %v85 = vsel %vm79, %v84, 0.0
      %86 = vadd.xlane.f32.xlu0 %v85
      %v87 = vpop.xlane.xlu0 %86
      %v88 = vrot.slane %v87, 4
      %v89 = vadd.f32 %v87, %v88
      %v90 = vrot.slane %v89, 2
      %v91 = vadd.f32 %v89, %v90
      %v92 = vrot.slane %v91, 1
      %v93 = vadd.f32 %v91, %v92
      %s94 = vtos %v93
      %v95 = vstv %s94
      %v96 = vsub.f32 0.0, %v95
      %vm97 = vcmask 0
      %98 = vst.msk [vmem:[#allocation4] sm:$0x1] %vm97, %v96
    $region17: #{tpu_custom_call.1} parent=1 // pred_fallthru
      _
    // Predicated region
    $region18: #{tpu_custom_call.1} parent=1 // pred_check
      _
    $region19: #{tpu_custom_call.1} parent=1 // pred_check_branch
      %100 = sbr.rel (0) target = $region21
    $region20: #{tpu_custom_call.1} parent=1 // pred_region
      %s102 = ssub.s32 16, 16
      %103 = vsyncadd [#allocation5], %s102
      %s105 = sshll.u32 [#allocation4], 4
      %s106 = int_to_ptr.vmem [resolvable:$true] %s105
      %108 = dma.vmem_to_hbm [thread:$0]  %s106, 16, %s2, [#allocation5]
    $region21: #{tpu_custom_call.1} parent=1 // pred_fallthru
      _
    // Predicated region
    $region22: #{tpu_custom_call.1} parent=1 // pred_check
      _
    $region23: #{tpu_custom_call.1} parent=1 // pred_check_branch
      %110 = sbr.rel (0) target = $region25
    $region24: #{tpu_custom_call.1} parent=1 // pred_region
      %111 = dma.done [#allocation5], 16
    $region25: #{tpu_custom_call.1} parent=1 // pred_fallthru
      _
    %112 = vsyncpa [#allocation5], 1

</llo_original>
